<compile_context>
chip_gen: v5e
topology: v5e:2x2
jax: 0.10.0
libtpu: 0.0.40
codegen_flags: <defaults>
</compile_context>

<pallas_src>
import functools

import jax
import jax.numpy as jnp
from jax.experimental import pallas as pl
from jax.experimental.pallas import tpu as pltpu

_LANE = 128
_SUBLANE = 8
_TARGET_HBM_BYTES_PER_STEP = 4 << 20   # >=4 MiB/step: DMA time per step >> 0.35 us overhead
_VMEM_WORKING_SET_BYTES = 32 << 20     # budget incl. double buffers + f32 intermediates
_VMEM_LIMIT_BYTES = 48 << 20           # <= v7x physical 64 MiB; fine on v5e/v6e (128 MiB)


def _round_up(x, m):
    return ((x + m - 1) // m) * m


def _elbo_kernel(scalars_ref, lik_ref, *rest, num_layers, samples, sample_reduction, dense):
    """scalars_ref (SMEM, f32): [beta, free_nats_0 .. free_nats_{L-1}] (-inf == no clamp)."""
    kl_refs = rest[:num_layers]
    out_ref = rest[num_layers]

    beta = scalars_ref[0]
    lik = lik_ref[...].astype(jnp.float32)          # native-dtype DMA, f32 cast in-kernel

    if num_layers == 0:
        kl_div = jnp.zeros_like(lik)
        kl_loss = kl_div
    else:
        kl0 = kl_refs[0][...].astype(jnp.float32)
        kl_div = kl0                                # init from first term (no zeros intermediate)
        kl_loss = jnp.maximum(kl0, scalars_ref[1])  # FreeNats clamp; -inf => identity
        for l in range(1, num_layers):              # static unroll over stochastic layers
            kl_l = kl_refs[l][...].astype(jnp.float32)
            kl_div = kl_div + kl_l
            kl_loss = kl_loss + jnp.maximum(kl_l, scalars_ref[1 + l])

    elbo = lik - kl_div
    loss = beta * kl_loss - lik

    if dense:
        # samples == 1 densified layout: blocks are (tile_rows, cols); out is (4, tile_rows, cols).
        # Each store below is a full lane-dense (tile_rows, cols) store.
        out_ref[0, :, :] = loss
        out_ref[1, :, :] = elbo
        out_ref[2, :, :] = lik
        out_ref[3, :, :] = kl_div
        return

    if samples == 1:
        # Static special case: no sample reduction needed (shapes are already (1, TB)).
        loss_r, elbo_r, lik_r, kld_r = loss, elbo, lik, kl_div
    else:
        if sample_reduction == "log_sum_exp":       # importance-weighted samples
            def _lse(x):                            # stable logsumexp over sublane (sample) dim
                m = jnp.max(x, axis=0, keepdims=True)
                return m + jnp.log(jnp.sum(jnp.exp(x - m), axis=0, keepdims=True))
            # TODO(synk): some IWAE conventions subtract log(samples); this matches the module's
            # log_sum_exp reduction as used in the in-file reference (plain logsumexp).
            loss_r, elbo_r = _lse(loss), _lse(elbo)
        else:                                       # "mean": Monte-Carlo samples
            inv_s = 1.0 / float(samples)            # constant reciprocal, no vector divide
            loss_r = jnp.sum(loss, axis=0, keepdims=True) * inv_s
            elbo_r = jnp.sum(elbo, axis=0, keepdims=True) * inv_s
        lik_r = jnp.sum(lik, axis=0, keepdims=True)  # "other" tensors reduce via sum
        kld_r = jnp.sum(kl_div, axis=0, keepdims=True)

    # Four 1-row stores into the packed (4, TB) block.  Kept as separate stores: the kernel is
    # HBM-bound so the masked-store cost is negligible, and a sublane concat of 1-row tiles is
    # a lowering risk not worth taking.
    out_ref[0:1, :] = loss_r
    out_ref[1:2, :] = elbo_r
    out_ref[2:3, :] = lik_r
    out_ref[3:4, :] = kld_r


def _choose_lane_tile(batch, samples, in_bytes_per_lane):
    """Lane tile (multiple of 128) sized from a per-step HBM target, capped by VMEM budget."""
    hbm_per_lane = in_bytes_per_lane + 4 * 4                     # inputs + packed f32 output
    # double-buffered inputs + double-buffered output + ~8 f32 (S,TB) in-kernel intermediates
    vmem_per_lane = 2 * in_bytes_per_lane + 2 * 4 * 4 + 8 * samples * 4
    tb = _TARGET_HBM_BYTES_PER_STEP // hbm_per_lane
    tb = min(tb, _VMEM_WORKING_SET_BYTES // vmem_per_lane)
    tb = max(_LANE, (tb // _LANE) * _LANE)
    tb = min(tb, _round_up(batch, _LANE))
    if batch > 2 * _LANE:
        # Keep >= 2 grid steps so the "parallel" batch axis can shard across v7x's 2 TensorCores.
        tb = min(tb, _round_up(pl.cdiv(batch, 2), _LANE))
    return tb


def _choose_dense_tiling(batch, bytes_per_elem):
    """(rows, cols, tile_rows) for the samples==1 densified layout (batch % 128 == 0, >= 1024)."""
    cols = _LANE
    for c in (32768, 16384, 8192, 4096, 2048, 1024, 512, 256, 128):
        if batch % c == 0 and batch // c >= _SUBLANE:
            cols = c
            break
    rows = batch // cols
    hbm_per_row = cols * (bytes_per_elem + 4 * 4)
    vmem_per_row = cols * (2 * bytes_per_elem + 2 * 4 * 4 + 8 * 4)
    tr = _TARGET_HBM_BYTES_PER_STEP // hbm_per_row
    tr = min(tr, _VMEM_WORKING_SET_BYTES // vmem_per_row)
    tr = max(_SUBLANE, (tr // _SUBLANE) * _SUBLANE)
    tr = min(tr, _round_up(rows, _SUBLANE))
    if rows > 2 * _SUBLANE:
        tr = min(tr, _round_up(pl.cdiv(rows, 2), _SUBLANE))     # >= 2 grid steps for v7x
    return rows, cols, tr


def elbo_pallas(likelihood, kl_divergences, *, samples=1, beta=1.0, free_nats=None,
                sample_reduction="log_sum_exp", batch_reduction=None, analytical_kl=False):
    """Pallas implementation of ELBO.forward. Returns (loss, elbo, likelihood, kl_divergence)."""
    if analytical_kl and sample_reduction == "log_sum_exp":
        raise ValueError("KL is not analytical under importance sampling")
    kls = [kl for kl in kl_divergences if kl is not None]
    num_layers = len(kls)
    sb = likelihood.shape[0]
    assert sb % samples == 0, "likelihood must have shape (samples * batch,)"
    batch = sb // samples

    if not isinstance(free_nats, (list, tuple)):
        free_nats = [free_nats] * num_layers
    free_nats = (list(free_nats) + [None] * num_layers)[:num_layers]

    # beta / free_nats travel as SMEM scalars -> no re-trace/recompile when beta is annealed.
    beta_arr = jnp.reshape(jnp.asarray(beta, dtype=jnp.float32), (1,))
    fn_arr = jnp.asarray([(-jnp.inf if f is None else float(f)) for f in free_nats],
                         dtype=jnp.float32).reshape(num_layers)
    scalars = jnp.concatenate([beta_arr, fn_arr]) if num_layers else beta_arr

    in_streams = [likelihood] + kls
    bytes_per_elem = sum(jnp.dtype(t.dtype).itemsize for t in in_streams)

    smem_spec = pl.BlockSpec(memory_space=pltpu.MemorySpace.SMEM)
    compiler_params = pltpu.CompilerParams(
        dimension_semantics=("parallel",),       # shard batch tiles across TCs (v7x)
        vmem_limit_bytes=_VMEM_LIMIT_BYTES,
    )

    # Densified layout for the common samples==1 case: full sublane occupancy.
    dense = (samples == 1) and (batch % _LANE == 0) and (batch >= _SUBLANE * _LANE)

    if dense:
        rows, cols, tr = _choose_dense_tiling(batch, bytes_per_elem)
        ins = [t.reshape(rows, cols) for t in in_streams]       # free reshape of contiguous (B,)
        grid = (pl.cdiv(rows, tr),)
        in_spec = pl.BlockSpec((tr, cols), lambda i: (i, 0))
        out_spec = pl.BlockSpec((4, tr, cols), lambda i: (0, i, 0))
        out_shape = jax.ShapeDtypeStruct((4, rows, cols), jnp.float32)
    else:
        tb = _choose_lane_tile(batch, samples, samples * bytes_per_elem)
        ins = [t.reshape(samples, batch) for t in in_streams]
        grid = (pl.cdiv(batch, tb),)                            # no jnp.pad: masked last block
        in_spec = pl.BlockSpec((samples, tb), lambda i: (0, i))
        out_spec = pl.BlockSpec((4, tb), lambda i: (0, i))
        out_shape = jax.ShapeDtypeStruct((4, batch), jnp.float32)

    kernel = functools.partial(
        _elbo_kernel, num_layers=num_layers, samples=samples,
        sample_reduction=sample_reduction, dense=dense)

    packed = pl.pallas_call(
        kernel,
        out_shape=out_shape,
        grid=grid,
        in_specs=[smem_spec] + [in_spec] * (1 + num_layers),
        out_specs=out_spec,
        compiler_params=compiler_params,
    )(scalars, *ins)

    if dense:
        loss, elbo, lik_out, kld = (packed[i].reshape(batch) for i in range(4))
    else:
        loss, elbo, lik_out, kld = (packed[i] for i in range(4))

    if batch_reduction == "sum":      # default is None (no batch reduction)
        loss, elbo, lik_out, kld = (jnp.sum(t) for t in (loss, elbo, lik_out, kld))
    elif batch_reduction == "mean":
        loss, elbo, lik_out, kld = (jnp.mean(t) for t in (loss, elbo, lik_out, kld))
    return loss, elbo, lik_out, kld


def _elbo_reference(likelihood, kls, *, samples, beta, free_nats, sample_reduction):
    """Pure-JAX reference mirroring the PyTorch module (defaults: batch_reduction=None)."""
    if not isinstance(free_nats, (list, tuple)):
        free_nats = [free_nats] * len(kls)
    kl_losses = [kl if f is None else jnp.maximum(kl, f) for f, kl in zip(free_nats, kls)]
    kl_loss = sum(kl_losses) if kls else jnp.zeros_like(likelihood)
    kl_div = sum(kls) if kls else jnp.zeros_like(likelihood)
    elbo = likelihood - kl_div
    loss = -likelihood + beta * kl_loss

    def split(x):
        return x.reshape(samples, -1)

    if samples > 1:
        def lse(x):
            m = jnp.max(x, axis=0)
            return m + jnp.log(jnp.sum(jnp.exp(x - m), axis=0))
        red = lse if sample_reduction == "log_sum_exp" else (lambda x: jnp.mean(x, axis=0))
        loss, elbo = red(split(loss)), red(split(elbo))
        likelihood = jnp.sum(split(likelihood), axis=0)
        kl_div = jnp.sum(split(kl_div), axis=0)
    return loss, elbo, likelihood, kl_div


def _check(got, want):
    for g, w in zip(got, want):
        assert g.shape == w.shape, (g.shape, w.shape)
        assert jnp.allclose(g, w, rtol=1e-5, atol=1e-5), (g, w)


if __name__ == "__main__":
    key = jax.random.PRNGKey(0)
    samples, batch, num_layers = 4, 8, 3
    k1, k2, k3 = jax.random.split(key, 3)

    # samplewise log-likelihood (samples * batch,) and per-layer KL divergences
    likelihood = -jnp.abs(jax.random.normal(k1, (samples * batch,), dtype=jnp.float32)) * 50.0
    kl_keys = jax.random.split(k2, num_layers)
    kl_divergences = [jnp.abs(jax.random.normal(k, (samples * batch,), dtype=jnp.float32)) * 2.0
                      for k in kl_keys]

    beta = 1.0
    free_nats = 0.5

    # 1) Importance-weighted (log_sum_exp) path — module default.
    out = elbo_pallas(likelihood, kl_divergences, samples=samples, beta=beta,
                      free_nats=free_nats, sample_reduction="log_sum_exp",
                      batch_reduction=None)
    jax.block_until_ready(out)
    _check(out, _elbo_reference(likelihood, kl_divergences, samples=samples, beta=beta,
                                free_nats=free_nats, sample_reduction="log_sum_exp"))

    # 2) Monte-Carlo (mean) path with free_nats=None and a different beta (SMEM scalar path).
    out_m = elbo_pallas(likelihood, kl_divergences, samples=samples, beta=0.7,
                        free_nats=None, sample_reduction="mean", batch_reduction=None)
    jax.block_until_ready(out_m)
    _check(out_m, _elbo_reference(likelihood, kl_divergences, samples=samples, beta=0.7,
                                  free_nats=None, sample_reduction="mean"))

    # 3) Single-sample generic path (batch not a multiple of 128 -> masked last block).
    out_1 = elbo_pallas(likelihood[:batch], [kl[:batch] for kl in kl_divergences], samples=1,
                        beta=beta, free_nats=free_nats, sample_reduction="log_sum_exp",
                        batch_reduction=None)
    jax.block_until_ready(out_1)
    _check(out_1, _elbo_reference(likelihood[:batch], [kl[:batch] for kl in kl_divergences],
                                  samples=1, beta=beta, free_nats=free_nats,
                                  sample_reduction="log_sum_exp"))

    # 4) Single-sample densified path (batch multiple of 8*128 -> full sublane occupancy).
    dense_batch, dense_layers = 2048, 2
    kd1, kd2 = jax.random.split(k3)
    lik_d = -jnp.abs(jax.random.normal(kd1, (dense_batch,), dtype=jnp.float32)) * 10.0
    kl_d = [jnp.abs(jax.random.normal(k, (dense_batch,), dtype=jnp.float32))
            for k in jax.random.split(kd2, dense_layers)]
    fn_d = [0.1, None]
    out_d = elbo_pallas(lik_d, kl_d, samples=1, beta=1.3, free_nats=fn_d,
                        sample_reduction="log_sum_exp", batch_reduction=None)
    jax.block_until_ready(out_d)
    _check(out_d, _elbo_reference(lik_d, kl_d, samples=1, beta=1.3, free_nats=fn_d,
                                  sample_reduction="log_sum_exp"))

    print("KERNEL_OK")
</pallas_src>

<mosaic_0001>
module attributes {stable_mosaic.version = 11 : i64} {
  func.func @_elbo_kernel(%arg0: i32, %arg1: memref<4xf32, #tpu.memory_space<smem>>, %arg2: memref<4x128xf32, #tpu.memory_space<vmem>>, %arg3: memref<4x128xf32, #tpu.memory_space<vmem>>, %arg4: memref<4x128xf32, #tpu.memory_space<vmem>>, %arg5: memref<4x128xf32, #tpu.memory_space<vmem>>, %arg6: memref<4x128xf32, #tpu.memory_space<vmem>>) attributes {dimension_semantics = [#tpu.dimension_semantics<parallel>], iteration_bounds = array<i64: 1>, scalar_prefetch = 0 : i64, scratch_operands = 0 : i64, tpu.core_type = #tpu.core_type<tc>, window_params = [{transform_indices = @transform_0, window_bounds = array<i64: 4>}, {transform_indices = @transform_1, window_bounds = array<i64: 4, 128>}, {transform_indices = @transform_2, window_bounds = array<i64: 4, 128>}, {transform_indices = @transform_3, window_bounds = array<i64: 4, 128>}, {transform_indices = @transform_4, window_bounds = array<i64: 4, 128>}, {transform_indices = @transform_5, window_bounds = array<i64: 4, 128>}]} {
    %c0 = arith.constant 0 : index
    %0 = memref.load %arg1[%c0] : memref<4xf32, #tpu.memory_space<smem>>
    %c0_0 = arith.constant 0 : index
    %c0_1 = arith.constant 0 : index
    %1 = vector.load %arg2[%c0_0, %c0_1] : memref<4x128xf32, #tpu.memory_space<vmem>>, vector<4x128xf32>
    %c0_2 = arith.constant 0 : index
    %c0_3 = arith.constant 0 : index
    %2 = vector.load %arg3[%c0_2, %c0_3] : memref<4x128xf32, #tpu.memory_space<vmem>>, vector<4x128xf32>
    %c1 = arith.constant 1 : index
    %3 = memref.load %arg1[%c1] : memref<4xf32, #tpu.memory_space<smem>>
    %4 = vector.broadcast %3 : f32 to vector<4x128xf32>
    %5 = arith.maximumf %2, %4 : vector<4x128xf32>
    %c0_4 = arith.constant 0 : index
    %c0_5 = arith.constant 0 : index
    %6 = vector.load %arg4[%c0_4, %c0_5] : memref<4x128xf32, #tpu.memory_space<vmem>>, vector<4x128xf32>
    %7 = arith.addf %2, %6 : vector<4x128xf32>
    %c2 = arith.constant 2 : index
    %8 = memref.load %arg1[%c2] : memref<4xf32, #tpu.memory_space<smem>>
    %9 = vector.broadcast %8 : f32 to vector<4x128xf32>
    %10 = arith.maximumf %6, %9 : vector<4x128xf32>
    %11 = arith.addf %5, %10 : vector<4x128xf32>
    %c0_6 = arith.constant 0 : index
    %c0_7 = arith.constant 0 : index
    %12 = vector.load %arg5[%c0_6, %c0_7] : memref<4x128xf32, #tpu.memory_space<vmem>>, vector<4x128xf32>
    %13 = arith.addf %7, %12 : vector<4x128xf32>
    %c3 = arith.constant 3 : index
    %14 = memref.load %arg1[%c3] : memref<4xf32, #tpu.memory_space<smem>>
    %15 = vector.broadcast %14 : f32 to vector<4x128xf32>
    %16 = arith.maximumf %12, %15 : vector<4x128xf32>
    %17 = arith.addf %11, %16 : vector<4x128xf32>
    %18 = arith.subf %1, %13 : vector<4x128xf32>
    %19 = vector.broadcast %0 : f32 to vector<4x128xf32>
    %20 = arith.mulf %19, %17 : vector<4x128xf32>
    %21 = arith.subf %20, %1 : vector<4x128xf32>
    %cst = arith.constant dense<0xFF800000> : vector<128xf32>
    %22 = vector.multi_reduction <maximumf>, %21, %cst [0] : vector<4x128xf32> to vector<128xf32>
    %23 = vector.shape_cast %22 : vector<128xf32> to vector<1x128xf32>
    %24 = vector.broadcast %23 : vector<1x128xf32> to vector<4x128xf32>
    %25 = arith.subf %21, %24 : vector<4x128xf32>
    %26 = math.exp %25 : vector<4x128xf32>
    %cst_8 = arith.constant dense<0.000000e+00> : vector<128xf32>
    %27 = vector.multi_reduction <add>, %26, %cst_8 [0] : vector<4x128xf32> to vector<128xf32>
    %28 = vector.shape_cast %27 : vector<128xf32> to vector<1x128xf32>
    %29 = math.log %28 : vector<1x128xf32>
    %30 = arith.addf %23, %29 : vector<1x128xf32>
    %cst_9 = arith.constant dense<0xFF800000> : vector<128xf32>
    %31 = vector.multi_reduction <maximumf>, %18, %cst_9 [0] : vector<4x128xf32> to vector<128xf32>
    %32 = vector.shape_cast %31 : vector<128xf32> to vector<1x128xf32>
    %33 = vector.broadcast %32 : vector<1x128xf32> to vector<4x128xf32>
    %34 = arith.subf %18, %33 : vector<4x128xf32>
    %35 = math.exp %34 : vector<4x128xf32>
    %cst_10 = arith.constant dense<0.000000e+00> : vector<128xf32>
    %36 = vector.multi_reduction <add>, %35, %cst_10 [0] : vector<4x128xf32> to vector<128xf32>
    %37 = vector.shape_cast %36 : vector<128xf32> to vector<1x128xf32>
    %38 = math.log %37 : vector<1x128xf32>
    %39 = arith.addf %32, %38 : vector<1x128xf32>
    %cst_11 = arith.constant dense<0.000000e+00> : vector<128xf32>
    %40 = vector.multi_reduction <add>, %1, %cst_11 [0] : vector<4x128xf32> to vector<128xf32>
    %41 = vector.shape_cast %40 : vector<128xf32> to vector<1x128xf32>
    %cst_12 = arith.constant dense<0.000000e+00> : vector<128xf32>
    %42 = vector.multi_reduction <add>, %13, %cst_12 [0] : vector<4x128xf32> to vector<128xf32>
    %43 = vector.shape_cast %42 : vector<128xf32> to vector<1x128xf32>
    %c0_13 = arith.constant 0 : index
    %c0_14 = arith.constant 0 : index
    %44 = vector.load %arg6[%c0_13, %c0_14] : memref<4x128xf32, #tpu.memory_space<vmem>>, vector<1x128xf32>
    tpu.vector_store %arg6[%c0_13, %c0_14], %30 {strides = array<i32>} : memref<4x128xf32, #tpu.memory_space<vmem>>, vector<1x128xf32>,
    %c1_15 = arith.constant 1 : index
    %c0_16 = arith.constant 0 : index
    %45 = vector.load %arg6[%c1_15, %c0_16] : memref<4x128xf32, #tpu.memory_space<vmem>>, vector<1x128xf32>
    tpu.vector_store %arg6[%c1_15, %c0_16], %39 {strides = array<i32>} : memref<4x128xf32, #tpu.memory_space<vmem>>, vector<1x128xf32>,
    %c2_17 = arith.constant 2 : index
    %c0_18 = arith.constant 0 : index
    %46 = vector.load %arg6[%c2_17, %c0_18] : memref<4x128xf32, #tpu.memory_space<vmem>>, vector<1x128xf32>
    tpu.vector_store %arg6[%c2_17, %c0_18], %41 {strides = array<i32>} : memref<4x128xf32, #tpu.memory_space<vmem>>, vector<1x128xf32>,
    %c3_19 = arith.constant 3 : index
    %c0_20 = arith.constant 0 : index
    %47 = vector.load %arg6[%c3_19, %c0_20] : memref<4x128xf32, #tpu.memory_space<vmem>>, vector<1x128xf32>
    tpu.vector_store %arg6[%c3_19, %c0_20], %43 {strides = array<i32>} : memref<4x128xf32, #tpu.memory_space<vmem>>, vector<1x128xf32>,
    return
  }
  func.func @transform_0(%arg0: i32) -> i32 {
    %c0_i32 = arith.constant 0 : i32
    %c0_i32_0 = arith.constant 0 : i32
    return %c0_i32 : i32
  }
  func.func @transform_1(%arg0: i32) -> (i32, i32) {
    %c0_i32 = arith.constant 0 : i32
    %c0_i32_0 = arith.constant 0 : i32
    return %c0_i32, %arg0 : i32, i32
  }
  func.func @transform_2(%arg0: i32) -> (i32, i32) {
    %c0_i32 = arith.constant 0 : i32
    %c0_i32_0 = arith.constant 0 : i32
    return %c0_i32, %arg0 : i32, i32
  }
  func.func @transform_3(%arg0: i32) -> (i32, i32) {
    %c0_i32 = arith.constant 0 : i32
    %c0_i32_0 = arith.constant 0 : i32
    return %c0_i32, %arg0 : i32, i32
  }
  func.func @transform_4(%arg0: i32) -> (i32, i32) {
    %c0_i32 = arith.constant 0 : i32
    %c0_i32_0 = arith.constant 0 : i32
    return %c0_i32, %arg0 : i32, i32
  }
  func.func @transform_5(%arg0: i32) -> (i32, i32) {
    %c0_i32 = arith.constant 0 : i32
    %c0_i32_0 = arith.constant 0 : i32
    return %c0_i32, %arg0 : i32, i32
  }
}

</mosaic_0001>

<llo_original>
// kernel: tpu_custom_call.1
$region0: #{tpu_custom_call.1}
  #allocation0 [shape = 'u32[]', space=smem, size = 0x4, offset = 0x4, fixed_abs, tag = 'smem constant byte address 0x4 - core index']
  #allocation1 [shape = 'u32[72,128]{1,0:T(1,128)}', space=vmem, size = 0x9000, scoped, tag = 'internal scratch']
  %s0 = inlined_call_operand.hbm [shape: f32[4], index: 0, kind: input, shape index: {}]
  %s1 = inlined_call_operand.hbm [shape: f32[4,8], index: 1, kind: input, shape index: {}]
  %s2 = inlined_call_operand.hbm [shape: f32[4,8], index: 2, kind: input, shape index: {}]
  %s3 = inlined_call_operand.hbm [shape: f32[4,8], index: 3, kind: input, shape index: {}]
  %s4 = inlined_call_operand.hbm [shape: f32[4,8], index: 4, kind: input, shape index: {}]
  %s5 = inlined_call_operand.hbm [shape: f32[4,8], index: 5, kind: output, shape index: {}]
  %s6 = sld [smem:[#allocation0]]
  $region50: #{tpu_custom_call.1} parent=0
    _
  %s8 = ssub.s32 1, %s6
  %s9 = scalar_select 0, %s8, %s6
  $region1: #{tpu_custom_call.1} parent=0
    #allocation2 [shape = 'u8[512]{0}', space=smem, size = 0x200, scoped, tag = 'input window, operand 0, single buffered']
    #allocation3 [shape = 's32[1]{0}', space=sflag, size = 0x4, scoped, tag = 'scoped memory for tpu_custom_call.1']
    #allocation4 [shape = 's32[1]{0}', space=sflag, size = 0x4, scoped, tag = 'scoped memory for tpu_custom_call.1']
    #allocation5 [shape = 's32[1]{0}', space=sflag, size = 0x4, scoped, tag = 'scoped memory for tpu_custom_call.1']
    #allocation6 [shape = 'u8[2048]{0}', space=vmem, size = 0x800, scoped, tag = 'input window, operand 1, single buffered']
    #allocation7 [shape = 'u8[2048]{0}', space=vmem, size = 0x800, scoped, tag = 'input window, operand 2, single buffered']
    #allocation8 [shape = 's32[1]{0}', space=sflag, size = 0x4, scoped, tag = 'scoped memory for tpu_custom_call.1']
    #allocation9 [shape = 'u8[2048]{0}', space=vmem, size = 0x800, scoped, tag = 'input window, operand 3, single buffered']
    #allocation10 [shape = 'u8[2048]{0}', space=vmem, size = 0x800, scoped, tag = 'input window, operand 4, single buffered']
    #allocation11 [shape = 's32[1]{0}', space=sflag, size = 0x4, scoped, tag = 'scoped memory for tpu_custom_call.1']
    #allocation12 [shape = 'u8[2048]{0}', space=vmem, size = 0x800, scoped, tag = 'output window, operand 0, single buffered']
    %10 = vsyncpa [#allocation5], 0
    %11 = vsyncpa [#allocation3], 0
    %12 = vsyncpa [#allocation8], 0
    %13 = vsyncpa [#allocation11], 0
    %14 = vsyncpa [#allocation4], 0
    // Predicated region
    $region2: #{tpu_custom_call.1} parent=1 // pred_check
      _
    $region3: #{tpu_custom_call.1} parent=1 // pred_check_branch
      %16 = sbr.rel (0) target = $region5
    $region4: #{tpu_custom_call.1} parent=1 // pred_region
      %18 = vsyncadd [#allocation5], 0
      %s20 = sshll.u32 %s0, 4
      %s21 = int_to_ptr.hbm [resolvable:$true] %s20
      %23 = dma.hbm_to_smem %s21, 16, [#allocation2], [#allocation5]
    $region5: #{tpu_custom_call.1} parent=1 // pred_fallthru
      _
    // Predicated region
    $region6: #{tpu_custom_call.1} parent=1 // pred_check
      _
    $region7: #{tpu_custom_call.1} parent=1 // pred_check_branch
      %25 = sbr.rel (0) target = $region9
    $region8: #{tpu_custom_call.1} parent=1 // pred_region
      %27 = vsyncadd [#allocation3], 0
      %s29 = sshll.u32 %s1, 4
      %s30 = int_to_ptr.hbm [resolvable:$true] %s29
      %s31 = sshll.u32 [#allocation6], 4
      %s32 = int_to_ptr.vmem [resolvable:$true] %s31
      %34 = dma.hbm_to_vmem [thread:$0]  %s30, 64, %s32, [#allocation3]
    $region9: #{tpu_custom_call.1} parent=1 // pred_fallthru
      _
    // Predicated region
    $region10: #{tpu_custom_call.1} parent=1 // pred_check
      _
    $region11: #{tpu_custom_call.1} parent=1 // pred_check_branch
      %36 = sbr.rel (0) target = $region13
    $region12: #{tpu_custom_call.1} parent=1 // pred_region
      %38 = vsyncadd [#allocation8], 0
      %s40 = sshll.u32 %s2, 4
      %s41 = int_to_ptr.hbm [resolvable:$true] %s40
      %s42 = sshll.u32 [#allocation7], 4
      %s43 = int_to_ptr.vmem [resolvable:$true] %s42
      %45 = dma.hbm_to_vmem [thread:$0]  %s41, 64, %s43, [#allocation8]
    $region13: #{tpu_custom_call.1} parent=1 // pred_fallthru
      _
    // Predicated region
    $region14: #{tpu_custom_call.1} parent=1 // pred_check
      _
    $region15: #{tpu_custom_call.1} parent=1 // pred_check_branch
      %47 = sbr.rel (0) target = $region17
    $region16: #{tpu_custom_call.1} parent=1 // pred_region
      %49 = vsyncadd [#allocation8], 0
      %s51 = sshll.u32 %s3, 4
      %s52 = int_to_ptr.hbm [resolvable:$true] %s51
      %s53 = sshll.u32 [#allocation9], 4
      %s54 = int_to_ptr.vmem [resolvable:$true] %s53
      %56 = dma.hbm_to_vmem [thread:$0]  %s52, 64, %s54, [#allocation8]
    $region17: #{tpu_custom_call.1} parent=1 // pred_fallthru
      _
    // Predicated region
    $region18: #{tpu_custom_call.1} parent=1 // pred_check
      _
    $region19: #{tpu_custom_call.1} parent=1 // pred_check_branch
      %58 = sbr.rel (0) target = $region21
    $region20: #{tpu_custom_call.1} parent=1 // pred_region
      %60 = vsyncadd [#allocation11], 0
      %s62 = sshll.u32 %s4, 4
      %s63 = int_to_ptr.hbm [resolvable:$true] %s62
      %s64 = sshll.u32 [#allocation10], 4
      %s65 = int_to_ptr.vmem [resolvable:$true] %s64
      %67 = dma.hbm_to_vmem [thread:$0]  %s63, 64, %s65, [#allocation11]
    $region21: #{tpu_custom_call.1} parent=1 // pred_fallthru
      _
    // Predicated region
    $region22: #{tpu_custom_call.1} parent=1 // pred_check
      _
    $region23: #{tpu_custom_call.1} parent=1 // pred_check_branch
      %69 = sbr.rel (0) target = $region25
    $region24: #{tpu_custom_call.1} parent=1 // pred_region
      %71 = dma.done [#allocation5], 16
    $region25: #{tpu_custom_call.1} parent=1 // pred_fallthru
      _
    // Predicated region
    $region26: #{tpu_custom_call.1} parent=1 // pred_check
      _
    $region27: #{tpu_custom_call.1} parent=1 // pred_check_branch
      %73 = sbr.rel (0) target = $region29
    $region28: #{tpu_custom_call.1} parent=1 // pred_region
      %75 = dma.done [#allocation3], 64
    $region29: #{tpu_custom_call.1} parent=1 // pred_fallthru
      _
    // Predicated region
    $region30: #{tpu_custom_call.1} parent=1 // pred_check
      _
    $region31: #{tpu_custom_call.1} parent=1 // pred_check_branch
      %77 = sbr.rel (0) target = $region33
    $region32: #{tpu_custom_call.1} parent=1 // pred_region
      %79 = dma.done [#allocation8], 64
    $region33: #{tpu_custom_call.1} parent=1 // pred_fallthru
      _
    // Predicated region
    $region34: #{tpu_custom_call.1} parent=1 // pred_check
      _
    $region35: #{tpu_custom_call.1} parent=1 // pred_check_branch
      %81 = sbr.rel (0) target = $region37
    $region36: #{tpu_custom_call.1} parent=1 // pred_region
      %83 = dma.done [#allocation8], 64
    $region37: #{tpu_custom_call.1} parent=1 // pred_fallthru
      _
    // Predicated region
    $region38: #{tpu_custom_call.1} parent=1 // pred_check
      _
    $region39: #{tpu_custom_call.1} parent=1 // pred_check_branch
      %85 = sbr.rel (0) target = $region41
    $region40: #{tpu_custom_call.1} parent=1 // pred_region
      %87 = dma.done [#allocation11], 64
    $region41: #{tpu_custom_call.1} parent=1 // pred_fallthru
      _
    %88 = sfence
    %s89 = sld [smem:[#allocation2]]
    %v90 = vld [vmem:[#allocation6] sm:$0xf]
    %v91 = vld [vmem:[#allocation7] sm:$0xf]
    %s92 = sld [smem:[#allocation2 + $0x1]]
    %v93 = vstv %s92
    %v94 = vmax.f32 %v91, %v93
    %v95 = vld [vmem:[#allocation9] sm:$0xf]
    %v96 = vadd.f32 %v91, %v95
    %s97 = sld [smem:[#allocation2 + $0x2]]
    %v98 = vstv %s97
    %v99 = vmax.f32 %v95, %v98
    %v100 = vadd.f32 %v94, %v99
    %v101 = vld [vmem:[#allocation10] sm:$0xf]
    %v102 = vadd.f32 %v96, %v101
    %s103 = sld [smem:[#allocation2 + $0x3]]
    %v104 = vstv %s103
    %v105 = vmax.f32 %v101, %v104
    %v106 = vadd.f32 %v100, %v105
    %v107 = vsub.f32 %v90, %v102
    %v108 = vstv %s89
    %v109 = vmul.f32 %v108, %v106
    %v110 = vsub.f32 %v109, %v90
    %vm111 = vcmask 1043456
    %v112 = vsel %vm111, %v110, -inf
    %v113 = vrot.slane %v112, 4
    %v114 = vmax.f32 %v112, %v113
    %v115 = vrot.slane %v114, 2
    %v116 = vmax.f32 %v114, %v115
    %v117 = vrot.slane %v116, 1
    %v118 = vmax.f32 %v116, %v117
    %v119 = vsub.f32 %v110, %v118
    %v120 = vmul.f32 %v119, 1.442695
    %v121 = vpow.pop %v120
    %v122 = vsel %vm111, %v121, 0.0
    %v123 = vrot.slane %v122, 4
    %v124 = vadd.f32 %v122, %v123
    %v125 = vrot.slane %v124, 2
    %v126 = vadd.f32 %v124, %v125
    %v127 = vrot.slane %v126, 1
    %v128 = vadd.f32 %v126, %v127
    %v129 = vlog2.pop %v128
    %v130 = vmul.f32 %v129, 0.6931472
    %v131 = vadd.f32 %v118, %v130
    %v132 = vsel %vm111, %v107, -inf
    %v133 = vrot.slane %v132, 4
    %v134 = vmax.f32 %v132, %v133
    %v135 = vrot.slane %v134, 2
    %v136 = vmax.f32 %v134, %v135
    %v137 = vrot.slane %v136, 1
    %v138 = vmax.f32 %v136, %v137
    %v139 = vsub.f32 %v107, %v138
    %v140 = vmul.f32 %v139, 1.442695
    %v141 = vpow.pop %v140
    %v142 = vsel %vm111, %v141, 0.0
    %v143 = vrot.slane %v142, 4
    %v144 = vadd.f32 %v142, %v143
    %v145 = vrot.slane %v144, 2
    %v146 = vadd.f32 %v144, %v145
    %v147 = vrot.slane %v146, 1
    %v148 = vadd.f32 %v146, %v147
    %v149 = vlog2.pop %v148
    %v150 = vmul.f32 %v149, 0.6931472
    %v151 = vadd.f32 %v138, %v150
    %v152 = vsel %vm111, %v90, 0.0
    %v153 = vrot.slane %v152, 4
    %v154 = vadd.f32 %v152, %v153
    %v155 = vrot.slane %v154, 2
    %v156 = vadd.f32 %v154, %v155
    %v157 = vrot.slane %v156, 1
    %v158 = vadd.f32 %v156, %v157
    %v159 = vsel %vm111, %v102, 0.0
    %v160 = vrot.slane %v159, 4
    %v161 = vadd.f32 %v159, %v160
    %v162 = vrot.slane %v161, 2
    %v163 = vadd.f32 %v161, %v162
    %v164 = vrot.slane %v163, 1
    %v165 = vadd.f32 %v163, %v164
    %166 = vst [vmem:[#allocation12] sm:$0x1] %v131
    %167 = vst [vmem:[#allocation12 + $0x1] sm:$0x1] %v151
    %168 = vst [vmem:[#allocation12 + $0x2] sm:$0x1] %v158
    %169 = vst [vmem:[#allocation12 + $0x3] sm:$0x1] %v165
    // Predicated region
    $region42: #{tpu_custom_call.1} parent=1 // pred_check
      _
    $region43: #{tpu_custom_call.1} parent=1 // pred_check_branch
      %171 = sbr.rel (0) target = $region45
    $region44: #{tpu_custom_call.1} parent=1 // pred_region
      %173 = vsyncadd [#allocation4], 0
      %s175 = sshll.u32 [#allocation12], 4
      %s176 = int_to_ptr.vmem [resolvable:$true] %s175
      %s177 = sshll.u32 %s5, 4
      %s178 = int_to_ptr.hbm [resolvable:$true] %s177
      %180 = dma.vmem_to_hbm [thread:$0]  %s176, 64, %s178, [#allocation4]
    $region45: #{tpu_custom_call.1} parent=1 // pred_fallthru
      _
    // Predicated region
    $region46: #{tpu_custom_call.1} parent=1 // pred_check
      _
    $region47: #{tpu_custom_call.1} parent=1 // pred_check_branch
      %182 = sbr.rel (0) target = $region49
    $region48: #{tpu_custom_call.1} parent=1 // pred_region
      %184 = dma.done [#allocation4], 64
    $region49: #{tpu_custom_call.1} parent=1 // pred_fallthru
      _
    %185 = vsyncpa [#allocation3], 1
    %186 = vsyncpa [#allocation8], 1
    %187 = vsyncpa [#allocation11], 1
    %188 = vsyncpa [#allocation4], 1
    %189 = vsyncpa [#allocation5], 1

</llo_original>
